<compile_context>
chip_gen: v7x
topology: tpu7x:2x2x1
jax: 0.10.0
libtpu: 0.0.40
codegen_flags: <defaults>
</compile_context>

<pallas_src>
import jax
import jax.numpy as jnp
from jax.experimental import pallas as pl
from jax.experimental.pallas import tpu as pltpu

_LANES = 128


def _mul_kernel(factor_ref, x_ref, o_ref):
    # factor is a (1,) f32 scalar in SMEM; broadcast multiply runs on the VPU.
    # The kernel is HBM-bandwidth bound; no VLIW slot comes close to saturating.
    o_ref[...] = x_ref[...].astype(o_ref.dtype) * factor_ref[0].astype(o_ref.dtype)


def _round_up(a, m):
    return (a + m - 1) // m * m


def _sublane_pack(dtype):
    # 8 sublanes for 32-bit dtypes, 16 for 16-bit, 32 for 8-bit.
    itemsize = jnp.dtype(dtype).itemsize
    return 8 * max(1, 4 // itemsize)


def _tpu_kind():
    try:
        return jax.devices()[0].device_kind.lower()
    except Exception:
        return ""


def identity_inverse_forward(x, factor, *, multiply_forward=False):
    """Pallas implementation of IdentityInverse.forward.

    x:      arbitrary-shaped float array (e.g. NCHW [B, C, H, W])
    factor: shape-(1,) parameter (torch.ones(1) equivalent, float32)
    """
    if not multiply_forward:
        # Identity path: free at trace time; no kernel, no HBM traffic.
        return x

    factor = factor.astype(jnp.float32)                       # torch param is f32
    out_dtype = jnp.promote_types(x.dtype, factor.dtype)      # torch promotion
    n = x.size

    if n == 0 or n % _LANES != 0:
        # Odd-size / empty tail: a single fused XLA multiply is strictly
        # cheaper than pad -> kernel -> slice (each is an extra full HBM pass).
        return (x * factor[0]).astype(out_dtype)

    in_itemsize = jnp.dtype(x.dtype).itemsize
    out_itemsize = jnp.dtype(out_dtype).itemsize
    pack = max(_sublane_pack(x.dtype), _sublane_pack(out_dtype))

    rows = n // _LANES
    x2d = jnp.reshape(x, (rows, _LANES))                       # zero-copy, lane-dense

    kind = _tpu_kind()
    is_v7 = "v7" in kind
    # Per-buffer tile target in bytes.  v7x HBM is ~2.3x faster so per-step
    # overhead is proportionally larger -> use bigger tiles there; 2 MiB
    # elsewhere keeps the 4-buffer footprint (in+out, double-buffered) at
    # 8 MiB, well under v5e's 16 MiB default scoped VMEM.
    target_bytes = (4 if is_v7 else 2) * 1024 * 1024
    bytes_per_row = _LANES * max(in_itemsize, out_itemsize)
    tr = _round_up(max(pack, min(target_bytes // bytes_per_row, rows)), pack)
    if is_v7 and rows > pack:
        # Guarantee >= 2 grid steps so the "parallel" axis shards across both
        # TensorCores on v7x (single-TC v5e/v6e skip this).
        tr = min(tr, _round_up(pl.cdiv(rows, 2), pack))
    if tr >= rows:
        tr = rows                     # single full-extent block (layout-legal)
    grid = (pl.cdiv(rows, tr),)

    out2d = pl.pallas_call(
        _mul_kernel,
        out_shape=jax.ShapeDtypeStruct((rows, _LANES), out_dtype),
        grid_spec=pltpu.PrefetchScalarGridSpec(
            num_scalar_prefetch=0,
            grid=grid,
            in_specs=[
                pl.BlockSpec(memory_space=pltpu.SMEM),           # factor (1,) f32
                pl.BlockSpec((tr, _LANES), lambda i: (i, 0)),    # x tile
            ],
            out_specs=pl.BlockSpec((tr, _LANES), lambda i: (i, 0)),
        ),
        compiler_params=pltpu.CompilerParams(
            dimension_semantics=("parallel",),        # shards across TCs on v7x
            vmem_limit_bytes=32 * 1024 * 1024,        # safe on v5e/v6e/v7x
        ),
        cost_estimate=pl.CostEstimate(
            flops=n, transcendentals=0,
            bytes_accessed=n * (in_itemsize + out_itemsize)),
    )(factor, x2d)

    return jnp.reshape(out2d, x.shape)


if __name__ == "__main__":
    key = jax.random.PRNGKey(0)
    x = jax.random.normal(key, (2, 4, 16, 16), dtype=jnp.float32)

    # Deterministic parameter init, matching torch.ones(1).
    factor = jnp.ones((1,), dtype=jnp.float32)

    # multiply_forward=True exercises the multiply kernel.
    y_mul = identity_inverse_forward(x, factor, multiply_forward=True)
    # multiply_forward=False (default module config) -> identity, no kernel.
    y_id = identity_inverse_forward(x, factor, multiply_forward=False)

    # Non-unit factor so the multiply path is actually validated numerically.
    factor2 = jnp.full((1,), 1.5, dtype=jnp.float32)
    y_mul2 = identity_inverse_forward(x, factor2, multiply_forward=True)

    # Size not divisible by 128 exercises the plain-XLA fallback.
    x_odd = jax.random.normal(key, (3, 5, 7, 9), dtype=jnp.float32)
    y_odd = identity_inverse_forward(x_odd, factor2, multiply_forward=True)

    # bf16 input exercises dtype promotion (torch: bf16 * f32 param -> f32).
    x_bf = x.astype(jnp.bfloat16)
    y_bf = identity_inverse_forward(x_bf, factor2, multiply_forward=True)

    jax.block_until_ready((y_mul, y_id, y_mul2, y_odd, y_bf))

    assert y_mul.shape == x.shape and y_mul.dtype == x.dtype
    assert jnp.allclose(y_mul, x * factor[0], atol=0, rtol=0)
    assert jnp.allclose(y_id, x, atol=0, rtol=0)
    assert jnp.allclose(y_mul2, x * factor2[0], atol=0, rtol=0)
    assert jnp.allclose(y_odd, x_odd * factor2[0], atol=0, rtol=0)
    assert y_bf.dtype == jnp.float32
    assert jnp.allclose(y_bf, x_bf.astype(jnp.float32) * factor2[0], rtol=1e-6)
    print("KERNEL_OK")
</pallas_src>

<mosaic_0001>
module attributes {stable_mosaic.version = 11 : i64} {
  func.func @_mul_kernel(%arg0: i32, %arg1: memref<1xf32, #tpu.memory_space<smem>>, %arg2: memref<16x128xf32, #tpu.memory_space<vmem>>, %arg3: memref<16x128xf32, #tpu.memory_space<vmem>>) attributes {dimension_semantics = [#tpu.dimension_semantics<parallel>], iteration_bounds = array<i64: 1>, scalar_prefetch = 0 : i64, scratch_operands = 0 : i64, tpu.core_type = #tpu.core_type<tc>, window_params = [{transform_indices = @transform_0, window_bounds = array<i64: 1>}, {transform_indices = @transform_1, window_bounds = array<i64: 16, 128>}, {transform_indices = @transform_2, window_bounds = array<i64: 16, 128>}]} {
    %c0 = arith.constant 0 : index
    %c0_0 = arith.constant 0 : index
    %0 = vector.load %arg2[%c0, %c0_0] : memref<16x128xf32, #tpu.memory_space<vmem>>, vector<16x128xf32>
    %c0_1 = arith.constant 0 : index
    %1 = memref.load %arg1[%c0_1] : memref<1xf32, #tpu.memory_space<smem>>
    %2 = vector.broadcast %1 : f32 to vector<16x128xf32>
    %3 = arith.mulf %0, %2 : vector<16x128xf32>
    %c0_2 = arith.constant 0 : index
    %c0_3 = arith.constant 0 : index
    %4 = vector.load %arg3[%c0_2, %c0_3] : memref<16x128xf32, #tpu.memory_space<vmem>>, vector<16x128xf32>
    tpu.vector_store %arg3[%c0_2, %c0_3], %3 {strides = array<i32>} : memref<16x128xf32, #tpu.memory_space<vmem>>, vector<16x128xf32>,
    return
  }
  func.func @transform_0(%arg0: i32) -> i32 {
    %c0_i32 = arith.constant 0 : i32
    %c0_i32_0 = arith.constant 0 : i32
    return %c0_i32 : i32
  }
  func.func @transform_1(%arg0: i32) -> (i32, i32) {
    %c0_i32 = arith.constant 0 : i32
    %c0_i32_0 = arith.constant 0 : i32
    return %arg0, %c0_i32 : i32, i32
  }
  func.func @transform_2(%arg0: i32) -> (i32, i32) {
    %c0_i32 = arith.constant 0 : i32
    %c0_i32_0 = arith.constant 0 : i32
    return %arg0, %c0_i32 : i32, i32
  }
}

</mosaic_0001>

<llo_original>
// kernel: tpu_custom_call.1
$region0: #{tpu_custom_call.1}
  #allocation0 [shape = 'u32[]', space=smem, size = 0x4, offset = 0x4, fixed_abs, tag = 'smem constant byte address 0x4 - core index']
  #allocation1 [shape = 'u32[144,128]{1,0:T(1,128)}', space=vmem, size = 0x12000, scoped, tag = 'internal scratch']
  #allocation2 [shape = 'f32[1]{0:T(128)S(6)}', space=smem, size = 0x200, scoped, tag = 'scoped memory for tpu_custom_call.1']
  %s0 = inlined_call_operand.<no memory space> [shape: f32[1], index: 0, kind: input, shape index: {}]
  %s1 = inlined_call_operand.hbm [shape: f32[16,128], index: 1, kind: input, shape index: {}]
  %s2 = inlined_call_operand.hbm [shape: f32[16,128], index: 2, kind: output, shape index: {}]
  %s3 = sld [smem:[#allocation0]]
  $region22: #{tpu_custom_call.1} parent=0
    _
  %s5 = ssub.s32 1, %s3
  %s6 = scalar_select 0, %s5, %s3
  %7 = sst [smem:[#allocation2]] %s0
  $region1: #{tpu_custom_call.1} parent=0
    #allocation3 [shape = 'u8[8192]{0}', space=vmem, size = 0x2000, scoped, tag = 'input window, operand 1, single buffered']
    #allocation4 [shape = 's32[1]{0}', space=sflag, size = 0x4, scoped, tag = 'scoped memory for tpu_custom_call.1']
    #allocation5 [shape = 's32[1]{0}', space=sflag, size = 0x4, scoped, tag = 'scoped memory for tpu_custom_call.1']
    #allocation6 [shape = 'u8[8192]{0}', space=vmem, size = 0x2000, scoped, tag = 'output window, operand 0, single buffered']
    %8 = vsyncpa [#allocation4], 0
    %9 = vsyncpa [#allocation5], 0
    // Predicated region
    $region2: #{tpu_custom_call.1} parent=1 // pred_check
      _
    $region3: #{tpu_custom_call.1} parent=1 // pred_check_branch
      %11 = sbr.rel (0) target = $region5
    $region4: #{tpu_custom_call.1} parent=1 // pred_region
      _
    $region5: #{tpu_custom_call.1} parent=1 // pred_fallthru
      _
    // Predicated region
    $region6: #{tpu_custom_call.1} parent=1 // pred_check
      _
    $region7: #{tpu_custom_call.1} parent=1 // pred_check_branch
      %13 = sbr.rel (0) target = $region9
    $region8: #{tpu_custom_call.1} parent=1 // pred_region
      %s15 = ssub.s32 256, 256
      %16 = vsyncadd [#allocation4], %s15
      %s17 = sshll.u32 [#allocation3], 4
      %s18 = int_to_ptr.vmem [resolvable:$true] %s17
      %23 = dma.hbm_to_vmem [thread:$0]  %s1, 256, %s18, [#allocation4], 128, 128, 8
    $region9: #{tpu_custom_call.1} parent=1 // pred_fallthru
      _
    // Predicated region
    $region10: #{tpu_custom_call.1} parent=1 // pred_check
      _
    $region11: #{tpu_custom_call.1} parent=1 // pred_check_branch
      %25 = sbr.rel (0) target = $region13
    $region12: #{tpu_custom_call.1} parent=1 // pred_region
      %26 = dma.done [#allocation4], 256
    $region13: #{tpu_custom_call.1} parent=1 // pred_fallthru
      _
    %v27 = vld [vmem:[#allocation3] sm:$0xff]
    %v28 = vld [vmem:[#allocation3 + $0x8] sm:$0xff]
    %s29 = sld [smem:[#allocation2]]
    %v30 = vstv %s29
    %v31 = vmul.f32 %v27, %v30
    %v32 = vmul.f32 %v28, %v30
    %33 = vst [vmem:[#allocation6] sm:$0xff] %v31
    %34 = vst [vmem:[#allocation6 + $0x8] sm:$0xff] %v32
    // Predicated region
    $region14: #{tpu_custom_call.1} parent=1 // pred_check
      _
    $region15: #{tpu_custom_call.1} parent=1 // pred_check_branch
      %36 = sbr.rel (0) target = $region17
    $region16: #{tpu_custom_call.1} parent=1 // pred_region
      %s38 = ssub.s32 256, 256
      %39 = vsyncadd [#allocation5], %s38
      %s40 = sshll.u32 [#allocation6], 4
      %s41 = int_to_ptr.vmem [resolvable:$true] %s40
      %46 = dma.vmem_to_hbm [thread:$0]  %s41, 256, %s2, [#allocation5], 128, 128, 8
    $region17: #{tpu_custom_call.1} parent=1 // pred_fallthru
      _
    // Predicated region
    $region18: #{tpu_custom_call.1} parent=1 // pred_check
      _
    $region19: #{tpu_custom_call.1} parent=1 // pred_check_branch
      %48 = sbr.rel (0) target = $region21
    $region20: #{tpu_custom_call.1} parent=1 // pred_region
      %49 = dma.done [#allocation5], 256
    $region21: #{tpu_custom_call.1} parent=1 // pred_fallthru
      _
    %50 = vsyncpa [#allocation4], 1
    %51 = vsyncpa [#allocation5], 1

</llo_original>
